<compile_context>
chip_gen: v5e
topology: v5e:2x2
jax: 0.10.0
libtpu: 0.0.40
codegen_flags: <defaults>
</compile_context>

<pallas_src>
import functools

import jax
import jax.numpy as jnp
from jax import lax
from jax.experimental import pallas as pl
from jax.experimental.pallas import tpu as pltpu


_OUT_SUB, _OUT_LANE = 8, 128   # lane-aligned per-frame scalar output tile


def _round_up(x, m):
    return (x + m - 1) // m * m


def _vmem_capacity_bytes():
    """Physical VMEM of the local TPU (conservative fallback: 64 MiB = v7x)."""
    try:
        info = pltpu.get_tpu_info()
        for attr in ("vmem_capacity_bytes", "vmem_size_bytes", "vmem_bytes"):
            cap = getattr(info, attr, None)
            if cap:
                return int(cap)
    except Exception:
        pass
    return 64 << 20


def _pipeline_vmem_need(N, tk, itemsize):
    # 2 inputs x 2 pipeline buffers + (N, N) f32 accumulator + one MXU result
    # tile of headroom + the tiny output tile.
    return 4 * N * tk * itemsize + 2 * N * N * 4 + _OUT_SUB * _OUT_LANE * 4


def _choose_k_tiling(M, N, itemsize, budget_bytes, *, tk_cap=2048):
    """Pick (tk, Mp, num_k) for the K (= H*W) axis.

    Preference order: (a) no host-side padding (tk == M, or tk a 128-multiple
    divisor of round_up(M, 128)), (b) DMA row segments >= ~512 B, (c) the
    largest tile the VMEM budget allows (amortizes ~0.35 us per grid step).
    """
    min_tk = max(128, 512 // itemsize)          # >= 512 B row chunks per DMA

    tk_budget = tk_cap
    while tk_budget > min_tk and _pipeline_vmem_need(N, tk_budget, itemsize) > budget_bytes:
        tk_budget -= 128
    tk_budget = max(tk_budget - tk_budget % 128, 128)

    # Case 1: whole K axis in one block (a block dim equal to the full array
    # dim is always layout-legal, even if not a multiple of 128). No padding.
    if M <= tk_budget:
        return M, M, 1

    # Case 2: 128-multiple divisor of round_up(M, 128) -> at most 127 padded
    # columns (zero extra for usual VGG H*W, which is already 128-aligned).
    Mp128 = _round_up(M, 128)
    tk = tk_budget
    while tk >= min_tk:
        if Mp128 % tk == 0:
            return tk, Mp128, Mp128 // tk
        tk -= 128

    # Case 3 (rare awkward M): fall back to padding M up to a multiple of tk.
    tk = max(min_tk, tk_budget)
    Mp = _round_up(M, tk)
    return tk, Mp, Mp // tk


def _gram_diff_l1_kernel(x_ref, y_ref, o_ref, gdiff_acc, *, scale):
    """One (frame, K-tile) step of the fused gram-difference L1 reduction.

    x_ref, y_ref : (N, tk) tiles of the flattened output / target features of
                   the current frame (compute dtype; f32 MXU accumulation).
    o_ref        : (8, 128) lane-aligned tile broadcasting the per-frame scalar
                   mean(|Gx - Gy|) (gram-normalized); host reads [0, 0].
    gdiff_acc    : (N, N) f32 accumulator for Gx - Gy, resident across K.
    """
    k = pl.program_id(1)

    @pl.when(k == 0)
    def _():
        gdiff_acc[...] = jnp.zeros_like(gdiff_acc)

    # Trailing-axis contraction == X @ Xᵀ without materializing a transpose.
    # Accumulate each matmul straight into the scratch: no (N, N) temporaries,
    # no extra VPU pass; lowers to in-place MXU-result accumulation on v7x.
    dn = (((1,), (1,)), ((), ()))
    xb = x_ref[...]
    yb = y_ref[...]
    gdiff_acc[...] += lax.dot_general(xb, xb, dn,
                                      preferred_element_type=jnp.float32)
    gdiff_acc[...] -= lax.dot_general(yb, yb, dn,
                                      preferred_element_type=jnp.float32)

    @pl.when(k == pl.num_programs(1) - 1)
    def _():
        # scale = 1/(N*M)  (gram .div(a*b*c*d), applied to both grams)
        #       * 1/(N*N)  (L1Loss mean over the (N, N) gram entries)
        s = jnp.sum(jnp.abs(gdiff_acc[...])) * scale
        o_ref[...] = jnp.full((_OUT_SUB, _OUT_LANE), s, dtype=jnp.float32)


def gram_l1_mean_batched(output_features, target_features, *,
                         compute_dtype=jnp.bfloat16):
    """Per-frame mean(|gram(out) - gram(tgt)|) for stacked NCHW features.

    output_features / target_features: (T, B, C, H, W).  Returns (T,) float32.
    """
    T, B, C, H, W = output_features.shape
    assert target_features.shape == output_features.shape
    N = B * C
    M = H * W

    if compute_dtype is None:
        compute_dtype = output_features.dtype
    itemsize = jnp.dtype(compute_dtype).itemsize

    # Flatten + (optional) cast to the MXU-fast dtype; fuses with the frame
    # stacking concat done by the caller into a single XLA pass.
    xf = output_features.reshape(T, N, M).astype(compute_dtype)
    yf = target_features.reshape(T, N, M).astype(compute_dtype)

    # Generation-aware VMEM budgeting: ~42% of physical VMEM for the pipeline
    # on 64 MiB parts (v7x), ~70% on 128 MiB parts (v5e / v6e).
    cap = _vmem_capacity_bytes()
    budget = int(cap * 0.42) if cap <= (64 << 20) else int(cap * 0.70)

    tk, Mp, num_k = _choose_k_tiling(M, N, itemsize, budget)
    if Mp != M:
        # Zero columns do not change F·Fᵀ; for VGG shapes this branch is dead.
        xf = jnp.pad(xf, ((0, 0), (0, 0), (0, Mp - M)))
        yf = jnp.pad(yf, ((0, 0), (0, 0), (0, Mp - M)))

    vmem_limit = int(min(max(_pipeline_vmem_need(N, tk, itemsize) + (16 << 20),
                             32 << 20),
                         int(cap * 0.9)))

    # Normalization uses the ORIGINAL N*M, not the padded extent.
    kernel = functools.partial(
        _gram_diff_l1_kernel,
        scale=1.0 / (float(N) * float(M) * float(N) * float(N)),
    )

    cost = pl.CostEstimate(
        flops=int(4 * T * N * N * Mp),                      # two X·Xᵀ per tile
        transcendentals=0,
        bytes_accessed=int(2 * T * N * Mp * itemsize
                           + T * _OUT_SUB * _OUT_LANE * 4),
    )

    # TODO(synk): for very large N (B*C >~ 512) row/column-band the (N, N)
    # gram, skip lower-triangle bands (Gdiff is symmetric) and reconstruct the
    # |.| sum from diagonal + 2x off-diagonal bands to halve MXU work.
    out = pl.pallas_call(
        kernel,
        out_shape=jax.ShapeDtypeStruct((T, _OUT_SUB, _OUT_LANE), jnp.float32),
        grid_spec=pltpu.PrefetchScalarGridSpec(
            num_scalar_prefetch=0,
            grid=(T, num_k),                       # frames, K tiles (innermost)
            in_specs=[
                pl.BlockSpec((None, N, tk), lambda t, k: (t, 0, k)),
                pl.BlockSpec((None, N, tk), lambda t, k: (t, 0, k)),
            ],
            out_specs=pl.BlockSpec((None, _OUT_SUB, _OUT_LANE),
                                   lambda t, k: (t, 0, 0)),
            scratch_shapes=[
                pltpu.VMEM((N, N), jnp.float32),   # fused Gx - Gy accumulator
            ],
        ),
        compiler_params=pltpu.CompilerParams(
            dimension_semantics=("parallel", "arbitrary"),
            vmem_limit_bytes=vmem_limit,
        ),
        cost_estimate=cost,
    )(xf, yf)
    return out[:, 0, 0]


def style_loss_frames(output_features, target_features,
                      original_channel_norm=True,
                      compute_dtype=jnp.bfloat16):
    """Per-frame style loss.  Features are lists [frame][layer] of NCHW arrays."""
    num_frames = len(output_features)
    per_frame_loss = jnp.zeros((num_frames,), jnp.float32)
    # layers = ['relu2_2', 'relu3_3', 'relu4_3'] -> feature indices 1, 2, 3
    for i in range(3):
        of = jnp.stack([output_features[f][i + 1] for f in range(num_frames)],
                       axis=0)
        tf = jnp.stack([target_features[f][i + 1] for f in range(num_frames)],
                       axis=0)
        C_P = of.shape[2]
        divider = 2 ** (i + 1) if original_channel_norm else C_P ** 2
        layer_l1 = gram_l1_mean_batched(of, tf, compute_dtype=compute_dtype)
        per_frame_loss = per_frame_loss + layer_l1 / divider
    return per_frame_loss


def style_loss_forward(data_input, model_output, original_channel_norm=True,
                       compute_dtype=jnp.bfloat16):
    """Equivalent of StyleLoss.forward."""
    targets = data_input["targets"]
    num_frames = targets.shape[1]
    output_features = model_output["vgg_outputs"]   # [frame][layer] -> NCHW
    target_features = model_output["vgg_targets"]   # [frame][layer] -> NCHW
    per_frame = style_loss_frames(output_features[:num_frames],
                                  target_features[:num_frames],
                                  original_channel_norm, compute_dtype)
    return jnp.mean(per_frame, axis=0)


# ----------------------------- pure-JAX reference ---------------------------
def _gram_ref(x):
    a, b, c, d = x.shape
    f = x.reshape(a * b, c * d).astype(jnp.float32)
    return (f @ f.T) / (a * b * c * d)


def _style_loss_ref(data_input, model_output, original_channel_norm=True):
    targets = data_input["targets"]
    outs, tgts = model_output["vgg_outputs"], model_output["vgg_targets"]
    frame_losses = []
    for fidx in range(targets.shape[1]):
        loss = 0.0
        for i in range(3):
            of, tf = outs[fidx][i + 1], tgts[fidx][i + 1]
            C_P = of.shape[1]
            div = 2 ** (i + 1) if original_channel_norm else C_P ** 2
            loss = loss + jnp.mean(jnp.abs(_gram_ref(of) - _gram_ref(tf))) / div
        frame_losses.append(loss)
    return jnp.mean(jnp.stack(frame_losses))


if __name__ == "__main__":
    key = jax.random.PRNGKey(0)
    B, T = 2, 2  # batch, frames

    # Synthetic VGG-style pyramid per frame: index 0 unused by the loss,
    # indices 1..3 correspond to relu2_2 / relu3_3 / relu4_3.
    layer_shapes = [
        (B, 4, 32, 32),   # index 0 (unused)
        (B, 8, 16, 16),   # relu2_2
        (B, 16, 8, 8),    # relu3_3
        (B, 32, 4, 4),    # relu4_3
    ]

    def make_pyramid(key):
        feats = []
        for shape in layer_shapes:
            key, sub = jax.random.split(key)
            feats.append(jax.random.normal(sub, shape, dtype=jnp.float32))
        return key, feats

    vgg_outputs, vgg_targets = [], []
    for _ in range(T):
        key, out_feats = make_pyramid(key)
        key, tgt_feats = make_pyramid(key)
        vgg_outputs.append(out_feats)
        vgg_targets.append(tgt_feats)

    key, sub = jax.random.split(key)
    targets = jax.random.normal(sub, (B, T, 3, 16, 16), dtype=jnp.float32)

    data_input = {"targets": targets}
    model_output = {"vgg_outputs": vgg_outputs, "vgg_targets": vgg_targets}

    ref = _style_loss_ref(data_input, model_output, original_channel_norm=True)

    # Exact-precision path (keeps the native f32 inputs): tight check.
    loss_f32 = style_loss_forward(data_input, model_output,
                                  original_channel_norm=True,
                                  compute_dtype=None)
    loss_f32 = jax.block_until_ready(loss_f32)
    assert jnp.allclose(loss_f32, ref, rtol=1e-5, atol=1e-6), (loss_f32, ref)

    # Default fast path (bf16 MXU inputs, f32 accumulation): loose check.
    loss_bf16 = style_loss_forward(data_input, model_output,
                                   original_channel_norm=True)
    loss_bf16 = jax.block_until_ready(loss_bf16)
    assert jnp.allclose(loss_bf16, ref, rtol=3e-2, atol=1e-3), (loss_bf16, ref)

    print("KERNEL_OK")
</pallas_src>

<mosaic_0001>
module attributes {stable_mosaic.version = 11 : i64} {
  func.func @_gram_diff_l1_kernel(%arg0: i32, %arg1: i32, %arg2: memref<1x16x256xf32, #tpu.memory_space<vmem>>, %arg3: memref<1x16x256xf32, #tpu.memory_space<vmem>>, %arg4: memref<1x8x128xf32, #tpu.memory_space<vmem>>, %arg5: memref<16x16xf32, #tpu.memory_space<vmem>>) attributes {dimension_semantics = [#tpu.dimension_semantics<parallel>, #tpu.dimension_semantics<arbitrary>], iteration_bounds = array<i64: 2, 1>, scalar_prefetch = 0 : i64, scratch_operands = 1 : i64, tpu.core_type = #tpu.core_type<tc>, window_params = [{transform_indices = @transform_0, window_bounds = array<i64: 1, 16, 256>}, {transform_indices = @transform_1, window_bounds = array<i64: 1, 16, 256>}, {transform_indices = @transform_2, window_bounds = array<i64: 1, 8, 128>}]} {
    %c0_i32 = arith.constant 0 : i32
    %0 = arith.cmpi eq, %arg1, %c0_i32 : i32
    %1 = arith.extui %0 : i1 to i32
    %c0_i32_0 = arith.constant 0 : i32
    %2 = arith.cmpi ne, %1, %c0_i32_0 : i32
    scf.if %2 {
      %cst_17 = arith.constant 0.000000e+00 : f32
      %18 = vector.broadcast %cst_17 : f32 to vector<16x16xf32>
      %c0_18 = arith.constant 0 : index
      %c0_19 = arith.constant 0 : index
      %19 = vector.load %arg5[%c0_18, %c0_19] : memref<16x16xf32, #tpu.memory_space<vmem>>, vector<16x16xf32>
      tpu.vector_store %arg5[%c0_18, %c0_19], %18 {strides = array<i32>} : memref<16x16xf32, #tpu.memory_space<vmem>>, vector<16x16xf32>,
    } else {
    }
    %c0 = arith.constant 0 : index
    %c0_1 = arith.constant 0 : index
    %c0_2 = arith.constant 0 : index
    %3 = vector.load %arg2[%c0, %c0_1, %c0_2] : memref<1x16x256xf32, #tpu.memory_space<vmem>>, vector<1x16x256xf32>
    %4 = vector.shape_cast %3 : vector<1x16x256xf32> to vector<16x256xf32>
    %c0_3 = arith.constant 0 : index
    %c0_4 = arith.constant 0 : index
    %c0_5 = arith.constant 0 : index
    %5 = vector.load %arg3[%c0_3, %c0_4, %c0_5] : memref<1x16x256xf32, #tpu.memory_space<vmem>>, vector<1x16x256xf32>
    %6 = vector.shape_cast %5 : vector<1x16x256xf32> to vector<16x256xf32>
    %c0_6 = arith.constant 0 : index
    %c0_7 = arith.constant 0 : index
    %7 = vector.load %arg5[%c0_6, %c0_7] : memref<16x16xf32, #tpu.memory_space<vmem>>, vector<16x16xf32>
    %cst = arith.constant dense<0.000000e+00> : vector<16x16xf32>
    %8 = tpu.matmul %4, %4, %cst {dimension_numbers = #tpu.dot_dimension_numbers<[1], [1], [0], [0], [0, 0, 1, 0], [], []>} : vector<16x256xf32>, vector<16x256xf32>, vector<16x16xf32> -> vector<16x16xf32>
    %9 = arith.addf %7, %8 : vector<16x16xf32>
    %c0_8 = arith.constant 0 : index
    %c0_9 = arith.constant 0 : index
    %10 = vector.load %arg5[%c0_8, %c0_9] : memref<16x16xf32, #tpu.memory_space<vmem>>, vector<16x16xf32>
    tpu.vector_store %arg5[%c0_8, %c0_9], %9 {strides = array<i32>} : memref<16x16xf32, #tpu.memory_space<vmem>>, vector<16x16xf32>,
    %c0_10 = arith.constant 0 : index
    %c0_11 = arith.constant 0 : index
    %11 = vector.load %arg5[%c0_10, %c0_11] : memref<16x16xf32, #tpu.memory_space<vmem>>, vector<16x16xf32>
    %cst_12 = arith.constant dense<0.000000e+00> : vector<16x16xf32>
    %12 = tpu.matmul %6, %6, %cst_12 {dimension_numbers = #tpu.dot_dimension_numbers<[1], [1], [0], [0], [0, 0, 1, 0], [], []>} : vector<16x256xf32>, vector<16x256xf32>, vector<16x16xf32> -> vector<16x16xf32>
    %13 = arith.subf %11, %12 : vector<16x16xf32>
    %c0_13 = arith.constant 0 : index
    %c0_14 = arith.constant 0 : index
    %14 = vector.load %arg5[%c0_13, %c0_14] : memref<16x16xf32, #tpu.memory_space<vmem>>, vector<16x16xf32>
    tpu.vector_store %arg5[%c0_13, %c0_14], %13 {strides = array<i32>} : memref<16x16xf32, #tpu.memory_space<vmem>>, vector<16x16xf32>,
    %c0_i32_15 = arith.constant 0 : i32
    %15 = arith.cmpi eq, %arg1, %c0_i32_15 : i32
    %16 = arith.extui %15 : i1 to i32
    %c0_i32_16 = arith.constant 0 : i32
    %17 = arith.cmpi ne, %16, %c0_i32_16 : i32
    scf.if %17 {
      %c0_17 = arith.constant 0 : index
      %c0_18 = arith.constant 0 : index
      %18 = vector.load %arg5[%c0_17, %c0_18] : memref<16x16xf32, #tpu.memory_space<vmem>>, vector<16x16xf32>
      %19 = math.absf %18 : vector<16x16xf32>
      %20 = vector.shape_cast %19 : vector<16x16xf32> to vector<1x16x16xf32>
      %cst_19 = arith.constant dense<0.000000e+00> : vector<1xf32>
      %21 = vector.multi_reduction <add>, %20, %cst_19 [1, 2] : vector<1x16x16xf32> to vector<1xf32>
      %22 = vector.shape_cast %21 : vector<1xf32> to vector<1x1x1xf32>
      %23 = vector.extract %22[0, 0, 0] : f32 from vector<1x1x1xf32>
      %cst_20 = arith.constant 9.53674316E-7 : f32
      %24 = arith.mulf %23, %cst_20 : f32
      %25 = vector.broadcast %24 : f32 to vector<8x128xf32>
      %c0_21 = arith.constant 0 : index
      %c0_22 = arith.constant 0 : index
      %c0_23 = arith.constant 0 : index
      %26 = vector.load %arg4[%c0_21, %c0_22, %c0_23] : memref<1x8x128xf32, #tpu.memory_space<vmem>>, vector<1x8x128xf32>
      %27 = vector.shape_cast %26 : vector<1x8x128xf32> to vector<8x128xf32>
      %28 = vector.shape_cast %25 : vector<8x128xf32> to vector<1x8x128xf32>
      tpu.vector_store %arg4[%c0_21, %c0_22, %c0_23], %28 {strides = array<i32>} : memref<1x8x128xf32, #tpu.memory_space<vmem>>, vector<1x8x128xf32>,
    } else {
    }
    return
  }
  func.func @transform_0(%arg0: i32, %arg1: i32) -> (i32, i32, i32) {
    %c0_i32 = arith.constant 0 : i32
    %c0_i32_0 = arith.constant 0 : i32
    return %arg0, %c0_i32, %arg1 : i32, i32, i32
  }
  func.func @transform_1(%arg0: i32, %arg1: i32) -> (i32, i32, i32) {
    %c0_i32 = arith.constant 0 : i32
    %c0_i32_0 = arith.constant 0 : i32
    return %arg0, %c0_i32, %arg1 : i32, i32, i32
  }
  func.func @transform_2(%arg0: i32, %arg1: i32) -> (i32, i32, i32) {
    %c0_i32 = arith.constant 0 : i32
    %c0_i32_0 = arith.constant 0 : i32
    %c0_i32_1 = arith.constant 0 : i32
    return %arg0, %c0_i32, %c0_i32_0 : i32, i32, i32
  }
}

</mosaic_0001>

<llo_original>
// kernel: tpu_custom_call.1
$region0: #{tpu_custom_call.1}
  #allocation0 [shape = 'u32[]', space=smem, size = 0x4, offset = 0x4, fixed_abs, tag = 'smem constant byte address 0x4 - core index']
  #allocation1 [shape = 'u32[72,128]{1,0:T(1,128)}', space=vmem, size = 0x9000, scoped, tag = 'internal scratch']
  #allocation2 [shape = 'f32[16,16]{1,0:T(8,128)}', space=vmem, size = 0x2000, scoped, tag = 'scratch operand']
  %s0 = inlined_call_operand.hbm [shape: f32[2,16,256], index: 0, kind: input, shape index: {}]
  %s1 = inlined_call_operand.hbm [shape: f32[2,16,256], index: 1, kind: input, shape index: {}]
  %s2 = inlined_call_operand.hbm [shape: f32[2,8,128], index: 2, kind: output, shape index: {}]
  %s3 = sld [smem:[#allocation0]]
  $region57: #{tpu_custom_call.1} parent=0
    _
  %s5 = ssub.s32 1, %s3
  %s6 = scalar_select 0, %s5, %s3
  $region1: #{tpu_custom_call.1} parent=0
    #allocation3 [shape = 'u8[32768]{0}', space=vmem, size = 0x8000, scoped, tag = 'input window, operand 0']
    #allocation4 [shape = 's32[2]{0}', space=sflag, size = 0x8, scoped, tag = 'scoped memory for tpu_custom_call.1']
    #allocation5 [shape = 's32[2]{0}', space=sflag, size = 0x8, scoped, tag = 'scoped memory for tpu_custom_call.1']
    #allocation6 [shape = 'u8[32768]{0}', space=vmem, size = 0x8000, scoped, tag = 'input window, operand 1']
    #allocation7 [shape = 's32[2]{0}', space=sflag, size = 0x8, scoped, tag = 'scoped memory for tpu_custom_call.1']
    #allocation8 [shape = 'u8[8192]{0}', space=vmem, size = 0x2000, scoped, tag = 'output window, operand 0']
    %7 = vsyncpa [#allocation4], 0
    %s8 = scalar_lea.sflag [#allocation4], 1
    %9 = vsyncpa %s8, 0
    %10 = vsyncpa [#allocation7], 0
    %s11 = scalar_lea.sflag [#allocation7], 1
    %12 = vsyncpa %s11, 0
    %13 = vsyncpa [#allocation5], 0
    %s14 = scalar_lea.sflag [#allocation5], 1
    %15 = vsyncpa %s14, 0
    loop: start=0, step=1, limit=4
    $region2: #{tpu_custom_call.1} parent=1 // loop_pre_header
      _
    $region3: #{tpu_custom_call.1} parent=1 // loop_header
      %s17 = sphi 0, %s21
      %p18 = scmp.ge.s32.totalorder %s17, 4
      %s24 = sphi 0, %s36
      %s25 = sphi 0, %s32
      %s26 = sphi 0, %s24
      %s27 = sphi 0, %s25
      %s28 = sphi 0, %s26
      %s29 = sphi 0, %s27
      %s41 = sphi 0, %s43
      %s44 = sphi 0, %s41
      %s45 = sphi 0, %s44
      %s61 = sphi 0, %s45
      %s69 = sphi 0, %s71
      %s72 = sphi 0, %s69
      %s73 = sphi 0, %s72
      %s89 = sphi 0, %s73
      %s95 = sphi 0, %s97
      %s98 = sphi 0, %s95
      %s99 = sphi 0, %s98
      %s115 = sphi 0, %s99
    $region4: #{tpu_custom_call.1} parent=1 // loop_header_branch
      %20 = sbr.rel (%p18) target = $region8
    $region5: #{tpu_custom_call.1} parent=1 // loop_body
      %s22 = ssub.s32 %s17, 1
      %s23 = ssub.s32 %s17, 2
      %s30 = sadd.s32 1, %s25
      %p31 = scmp.ge.s32.totalorder %s30, 1
      %s32 = scalar_select %p31, 0, %s30
      %s33 = sadd.s32 1, %s24
      %s34 = scalar_select %p31, %s33, %s24
      %p35 = scmp.ge.s32.totalorder %s34, 2
      %s36 = scalar_select %p35, 0, %s34
      %s37 = ssub.s32 %s24, %s36
      %s38 = ssub.s32 %s25, %s32
      %s39 = sor.u32 %s37, %s38
      %p40 = scmp.eq.s32.totalorder %s39, 0
      %s42 = sadd.s32 %s41, 1
      %s43 = scalar_select %p40, %s41, %s42
      %p46 = pneg %p40
      %p47 = scmp.eq.s32.totalorder %s17, 1
      %p48 = por %p46, %p47
      %p49 = scmp.ne.s32.totalorder %s41, %s44
      %p50 = scmp.eq.s32.totalorder %s17, 0
      %p51 = por %p49, %p50
      %p52 = scmp.ne.s32.totalorder %s41, %s44
      %p53 = scmp.eq.s32.totalorder %s22, 1
      %p54 = por %p52, %p53
      %p55 = scmp.ne.s32.totalorder %s44, %s45
      %p56 = scmp.eq.s32.totalorder %s22, 0
      %p57 = por %p55, %p56
      %p58 = scmp.ne.s32.totalorder %s44, %s45
      %p59 = scmp.eq.s32.totalorder %s23, 1
      %p60 = por %p58, %p59
      %p62 = scmp.ne.s32.totalorder %s45, %s61
      %p63 = scmp.eq.s32.totalorder %s23, 0
      %p64 = por %p62, %p63
      %s65 = ssub.s32 %s24, %s36
      %s66 = ssub.s32 %s25, %s32
      %s67 = sor.u32 %s65, %s66
      %p68 = scmp.eq.s32.totalorder %s67, 0
      %s70 = sadd.s32 %s69, 1
      %s71 = scalar_select %p68, %s69, %s70
      %p74 = pneg %p68
      %p75 = scmp.eq.s32.totalorder %s17, 1
      %p76 = por %p74, %p75
      %p77 = scmp.ne.s32.totalorder %s69, %s72
      %p78 = scmp.eq.s32.totalorder %s17, 0
      %p79 = por %p77, %p78
      %p80 = scmp.ne.s32.totalorder %s69, %s72
      %p81 = scmp.eq.s32.totalorder %s22, 1
      %p82 = por %p80, %p81
      %p83 = scmp.ne.s32.totalorder %s72, %s73
      %p84 = scmp.eq.s32.totalorder %s22, 0
      %p85 = por %p83, %p84
      %p86 = scmp.ne.s32.totalorder %s72, %s73
      %p87 = scmp.eq.s32.totalorder %s23, 1
      %p88 = por %p86, %p87
      %p90 = scmp.ne.s32.totalorder %s73, %s89
      %p91 = scmp.eq.s32.totalorder %s23, 0
      %p92 = por %p90, %p91
      %s93 = ssub.s32 %s24, %s36
      %p94 = scmp.eq.s32.totalorder %s93, 0
      %s96 = sadd.s32 %s95, 1
      %s97 = scalar_select %p94, %s95, %s96
      %p100 = pneg %p94
      %p101 = scmp.eq.s32.totalorder %s17, 1
      %p102 = por %p100, %p101
      %p103 = scmp.ne.s32.totalorder %s95, %s98
      %p104 = scmp.eq.s32.totalorder %s17, 0
      %p105 = por %p103, %p104
      %p106 = scmp.ne.s32.totalorder %s95, %s98
      %p107 = scmp.eq.s32.totalorder %s22, 1
      %p108 = por %p106, %p107
      %p109 = scmp.ne.s32.totalorder %s98, %s99
      %p110 = scmp.eq.s32.totalorder %s22, 0
      %p111 = por %p109, %p110
      %p112 = scmp.ne.s32.totalorder %s98, %s99
      %p113 = scmp.eq.s32.totalorder %s23, 1
      %p114 = por %p112, %p113
      %p116 = scmp.ne.s32.totalorder %s99, %s115
      %p117 = scmp.eq.s32.totalorder %s23, 0
      %p118 = por %p116, %p117
      %p119 = scmp.le.s32.totalorder 1, %s17
      %p120 = scmp.lt.s32.totalorder %s17, 3
      %p121 = pnand %p119, %p120
      %p122 = pneg %p121
      // Predicated region
      $region9: #{tpu_custom_call.1} parent=5 // pred_check
        _
      $region10: #{tpu_custom_call.1} parent=5 // pred_check_branch
        %124 = sbr.rel (%p121) target = $region12
      $region11: #{tpu_custom_call.1} parent=5 // pred_region
        %s125 = ssub.s32 %s17, 1
      $region12: #{tpu_custom_call.1} parent=5 // pred_fallthru
        _
      %p126 = scmp.lt.s32.totalorder %s17, 2
      // Predicated region
      $region13: #{tpu_custom_call.1} parent=5 // pred_check
        %p127 = pneg %p126
      $region14: #{tpu_custom_call.1} parent=5 // pred_check_branch
        %129 = sbr.rel (%p127) target = $region16
      $region15: #{tpu_custom_call.1} parent=5 // pred_region
        // Predicated region
        $region17: #{tpu_custom_call.1} parent=15 // pred_check
          %p130 = pneg %p51
        $region18: #{tpu_custom_call.1} parent=15 // pred_check_branch
          %132 = sbr.rel (%p130) target = $region20
        $region19: #{tpu_custom_call.1} parent=15 // pred_region
          %s133 = sand.u32 %s41, 1
          %s134 = scalar_lea.sflag [#allocation4], %s133
          %s135 = sand.u32 %s41, 1
          %s136 = smul.addr %s135, 32
          %s137 = scalar_lea.vmem [#allocation3], %s136
          %s138 = smul.u32 2, %s25
          %140 = vsyncadd %s134, 0
          %s141 = smul.addr %s24, 4
          %s142 = sadd.s32 %s138, %s141
          %s143 = smul.addr %s142, 8
          %s144 = scalar_lea.hbm %s0, %s143
          %s145 = sshll.u32 %s144, 4
          %s146 = int_to_ptr.hbm [resolvable:$true] %s145
          %s147 = sshll.u32 %s137, 4
          %s148 = int_to_ptr.vmem [resolvable:$true] %s147
          %153 = dma.hbm_to_vmem [thread:$0]  %s146, 512, %s148, %s134, 256, 256, 16
        $region20: #{tpu_custom_call.1} parent=15 // pred_fallthru
          _
        // Predicated region
        $region21: #{tpu_custom_call.1} parent=15 // pred_check
          %p154 = pneg %p79
        $region22: #{tpu_custom_call.1} parent=15 // pred_check_branch
          %156 = sbr.rel (%p154) target = $region24
        $region23: #{tpu_custom_call.1} parent=15 // pred_region
          %s157 = sand.u32 %s69, 1
          %s158 = scalar_lea.sflag [#allocation7], %s157
          %s159 = sand.u32 %s69, 1
          %s160 = smul.addr %s159, 32
          %s161 = scalar_lea.vmem [#allocation6], %s160
          %s162 = smul.u32 2, %s25
          %164 = vsyncadd %s158, 0
          %s165 = smul.addr %s24, 4
          %s166 = sadd.s32 %s162, %s165
          %s167 = smul.addr %s166, 8
          %s168 = scalar_lea.hbm %s1, %s167
          %s169 = sshll.u32 %s168, 4
          %s170 = int_to_ptr.hbm [resolvable:$true] %s169
          %s171 = sshll.u32 %s161, 4
          %s172 = int_to_ptr.vmem [resolvable:$true] %s171
          %177 = dma.hbm_to_vmem [thread:$0]  %s170, 512, %s172, %s158, 256, 256, 16
        $region24: #{tpu_custom_call.1} parent=15 // pred_fallthru
          _
      $region16: #{tpu_custom_call.1} parent=5 // pred_fallthru
        _
      %p178 = scmp.le.s32.totalorder 1, %s17
      %p179 = scmp.lt.s32.totalorder %s17, 3
      %p180 = pnand %p178, %p179
      %p181 = pneg %p180
      // Predicated region
      $region25: #{tpu_custom_call.1} parent=5 // pred_check
        _
      $region26: #{tpu_custom_call.1} parent=5 // pred_check_branch
        %183 = sbr.rel (%p180) target = $region28
      $region27: #{tpu_custom_call.1} parent=5 // pred_region
        %s184 = ssub.s32 %s17, 1
        %s185 = sand.u32 %s44, 1
        %s186 = scalar_lea.sflag [#allocation4], %s185
        %s187 = sand.u32 %s44, 1
        %s188 = smul.addr %s187, 32
        %s189 = scalar_lea.vmem [#allocation3], %s188
        // Predicated region
        $region29: #{tpu_custom_call.1} parent=27 // pred_check
          %p190 = pneg %p57
        $region30: #{tpu_custom_call.1} parent=27 // pred_check_branch
          %192 = sbr.rel (%p190) target = $region32
        $region31: #{tpu_custom_call.1} parent=27 // pred_region
          %194 = dma.done %s186, 512
        $region32: #{tpu_custom_call.1} parent=27 // pred_fallthru
          _
        %s195 = sand.u32 %s72, 1
        %s196 = scalar_lea.sflag [#allocation7], %s195
        %s197 = sand.u32 %s72, 1
        %s198 = smul.addr %s197, 32
        %s199 = scalar_lea.vmem [#allocation6], %s198
        // Predicated region
        $region33: #{tpu_custom_call.1} parent=27 // pred_check
          %p200 = pneg %p85
        $region34: #{tpu_custom_call.1} parent=27 // pred_check_branch
          %202 = sbr.rel (%p200) target = $region36
        $region35: #{tpu_custom_call.1} parent=27 // pred_region
          %204 = dma.done %s196, 512
        $region36: #{tpu_custom_call.1} parent=27 // pred_fallthru
          _
        %s205 = sand.u32 %s44, 1
        %s206 = scalar_lea.sflag [#allocation4], %s205
        %s207 = sand.u32 %s44, 1
        %s208 = smul.addr %s207, 32
        %s209 = scalar_lea.vmem [#allocation3], %s208
        %p210 = pneg %p57
        %p211 = pneg %p54
        %s212 = sand.u32 %s72, 1
        %s213 = scalar_lea.sflag [#allocation7], %s212
        %s214 = sand.u32 %s72, 1
        %s215 = smul.addr %s214, 32
        %s216 = scalar_lea.vmem [#allocation6], %s215
        %p217 = pneg %p85
        %p218 = pneg %p82
        %p219 = pneg %p111
        %p220 = pneg %p108
        %s221 = sand.u32 %s98, 1
        %s222 = scalar_lea.sflag [#allocation5], %s221
        %s223 = sand.u32 %s98, 1
        %s224 = smul.addr %s223, 8
        %s225 = scalar_lea.vmem [#allocation8], %s224
        %s226 = smul.u32 2, %s27
        %s227 = smul.u32 2, %s27
        %p228 = scmp.eq.s32.totalorder %s27, 0
        // Predicated region
        $region37: #{tpu_custom_call.1} parent=27 // pred_check
          %p229 = pneg %p228
        $region38: #{tpu_custom_call.1} parent=27 // pred_check_branch
          %231 = sbr.rel (%p229) target = $region40
        $region39: #{tpu_custom_call.1} parent=27 // pred_region
          %vm232 = vcmask 130048
          %233 = vst.msk [vmem:[#allocation2] sm:$0xff] %vm232, 0.0
          %234 = vst.msk [vmem:[#allocation2 + $0x8] sm:$0xff] %vm232, 0.0
        $region40: #{tpu_custom_call.1} parent=27 // pred_fallthru
          _
        %v235 = vld [vmem:[%s189] sm:$0xff]
        %v236 = vld [vmem:[%s189 + $0x8] sm:$0xff]
        %v237 = vld [vmem:[%s189 + $0x10] sm:$0xff]
        %v238 = vld [vmem:[%s189 + $0x18] sm:$0xff]
        %v239 = vld [vmem:[%s199] sm:$0xff]
        %v240 = vld [vmem:[%s199 + $0x8] sm:$0xff]
        %v241 = vld [vmem:[%s199 + $0x10] sm:$0xff]
        %v242 = vld [vmem:[%s199 + $0x18] sm:$0xff]
        %v243 = vld [vmem:[#allocation2] sm:$0xff]
        %v244 = vld [vmem:[#allocation2 + $0x8] sm:$0xff]
        %245 = vmatpush.xpose.msra.mxu0 0.0
        %246 = vmatpush.xpose.msra.mxu0 0.0
        %247 = vmatpush.xpose.msra.mxu0 0.0
        %248 = vmatpush.xpose.msra.mxu0 0.0
        %249 = vmatpush.xpose.msra.mxu0 0.0
        %250 = vmatpush.xpose.msra.mxu0 0.0
        %251 = vmatpush.xpose.msra.mxu0 0.0
        %252 = vmatpush.xpose.msra.mxu0 0.0
        %253 = vmatpush.xpose.msra.mxu0 0.0
        %254 = vmatpush.xpose.msra.mxu0 0.0
        %255 = vmatpush.xpose.msra.mxu0 0.0
        %256 = vmatpush.xpose.msra.mxu0 0.0
        %257 = vmatpush.xpose.msra.mxu0 0.0
        %258 = vmatpush.xpose.msra.mxu0 0.0
        %259 = vmatpush.xpose.msra.mxu0 %v237
        %260 = vmatpush.xpose.msra.mxu0 %v235
        %261 = vmatmul.f32.gmra.mxu0 %v235
        %v262 = vpop.f32.mrf.mxu0
        %v263 = vadd.f32 0.0, %v262
        %264 = vmatmul.f32.gmra.mxu0 %v237
        %v265 = vpop.f32.mrf.mxu0
        %v266 = vadd.f32 0.0, %v265
        %267 = vdwg.mxu0
        %268 = vmatpush.xpose.msra.mxu0 0.0
        %269 = vmatpush.xpose.msra.mxu0 0.0
        %270 = vmatpush.xpose.msra.mxu0 0.0
        %271 = vmatpush.xpose.msra.mxu0 0.0
        %272 = vmatpush.xpose.msra.mxu0 0.0
        %273 = vmatpush.xpose.msra.mxu0 0.0
        %274 = vmatpush.xpose.msra.mxu0 0.0
        %275 = vmatpush.xpose.msra.mxu0 0.0
        %276 = vmatpush.xpose.msra.mxu0 0.0
        %277 = vmatpush.xpose.msra.mxu0 0.0
        %278 = vmatpush.xpose.msra.mxu0 0.0
        %279 = vmatpush.xpose.msra.mxu0 0.0
        %280 = vmatpush.xpose.msra.mxu0 0.0
        %281 = vmatpush.xpose.msra.mxu0 0.0
        %282 = vmatpush.xpose.msra.mxu0 %v238
        %283 = vmatpush.xpose.msra.mxu0 %v236
        %284 = vmatmul.f32.gmra.mxu0 %v236
        %v285 = vpop.f32.mrf.mxu0
        %v286 = vadd.f32 %v263, %v285
        %287 = vmatmul.f32.gmra.mxu0 %v238
        %v288 = vpop.f32.mrf.mxu0
        %v289 = vadd.f32 %v266, %v288
        %290 = vdwg.mxu0
        %v291 = vadd.f32 %v243, %v286
        %v292 = vadd.f32 %v244, %v289
        %vm293 = vcmask 130048
        %294 = vst.msk [vmem:[#allocation2] sm:$0xff] %vm293, %v291
        %295 = vst.msk [vmem:[#allocation2 + $0x8] sm:$0xff] %vm293, %v292
        %v296 = vld [vmem:[#allocation2] sm:$0xff]
        %v297 = vld [vmem:[#allocation2 + $0x8] sm:$0xff]
        %298 = vmatpush.xpose.msra.mxu0 0.0
        %299 = vmatpush.xpose.msra.mxu0 0.0
        %300 = vmatpush.xpose.msra.mxu0 0.0
        %301 = vmatpush.xpose.msra.mxu0 0.0
        %302 = vmatpush.xpose.msra.mxu0 0.0
        %303 = vmatpush.xpose.msra.mxu0 0.0
        %304 = vmatpush.xpose.msra.mxu0 0.0
        %305 = vmatpush.xpose.msra.mxu0 0.0
        %306 = vmatpush.xpose.msra.mxu0 0.0
        %307 = vmatpush.xpose.msra.mxu0 0.0
        %308 = vmatpush.xpose.msra.mxu0 0.0
        %309 = vmatpush.xpose.msra.mxu0 0.0
        %310 = vmatpush.xpose.msra.mxu0 0.0
        %311 = vmatpush.xpose.msra.mxu0 0.0
        %312 = vmatpush.xpose.msra.mxu0 %v241
        %313 = vmatpush.xpose.msra.mxu0 %v239
        %314 = vmatmul.f32.gmra.mxu0 %v239
        %v315 = vpop.f32.mrf.mxu0
        %v316 = vadd.f32 0.0, %v315
        %317 = vmatmul.f32.gmra.mxu0 %v241
        %v318 = vpop.f32.mrf.mxu0
        %v319 = vadd.f32 0.0, %v318
        %320 = vdwg.mxu0
        %321 = vmatpush.xpose.msra.mxu0 0.0
        %322 = vmatpush.xpose.msra.mxu0 0.0
        %323 = vmatpush.xpose.msra.mxu0 0.0
        %324 = vmatpush.xpose.msra.mxu0 0.0
        %325 = vmatpush.xpose.msra.mxu0 0.0
        %326 = vmatpush.xpose.msra.mxu0 0.0
        %327 = vmatpush.xpose.msra.mxu0 0.0
        %328 = vmatpush.xpose.msra.mxu0 0.0
        %329 = vmatpush.xpose.msra.mxu0 0.0
        %330 = vmatpush.xpose.msra.mxu0 0.0
        %331 = vmatpush.xpose.msra.mxu0 0.0
        %332 = vmatpush.xpose.msra.mxu0 0.0
        %333 = vmatpush.xpose.msra.mxu0 0.0
        %334 = vmatpush.xpose.msra.mxu0 0.0
        %335 = vmatpush.xpose.msra.mxu0 %v242
        %336 = vmatpush.xpose.msra.mxu0 %v240
        %337 = vmatmul.f32.gmra.mxu0 %v240
        %v338 = vpop.f32.mrf.mxu0
        %v339 = vadd.f32 %v316, %v338
        %340 = vmatmul.f32.gmra.mxu0 %v242
        %v341 = vpop.f32.mrf.mxu0
        %v342 = vadd.f32 %v319, %v341
        %343 = vdwg.mxu0
        %v344 = vsub.f32 %v296, %v339
        %v345 = vsub.f32 %v297, %v342
        %346 = vst.msk [vmem:[#allocation2] sm:$0xff] %vm293, %v344
        %347 = vst.msk [vmem:[#allocation2 + $0x8] sm:$0xff] %vm293, %v345
        // Predicated region
        $region41: #{tpu_custom_call.1} parent=27 // pred_check
          %p348 = pneg %p228
        $region42: #{tpu_custom_call.1} parent=27 // pred_check_branch
          %350 = sbr.rel (%p348) target = $region44
        $region43: #{tpu_custom_call.1} parent=27 // pred_region
          %v351 = vld [vmem:[#allocation2] sm:$0xff]
          %v352 = vld [vmem:[#allocation2 + $0x8] sm:$0xff]
          %v353 = vand.u32 2147483647, %v351
          %v354 = vand.u32 2147483647, %v352
          %v355 = vsel %vm293, %v353, 0.0
          %v356 = vsel %vm293, %v354, 0.0
          %v357 = vadd.f32 %v355, %v356
          %358 = vadd.xlane.f32.xlu0 %v357
          %v359 = vpop.xlane.xlu0 %358
          %v360 = vrot.slane %v359, 4
          %v361 = vadd.f32 %v359, %v360
          %v362 = vrot.slane %v361, 2
          %v363 = vadd.f32 %v361, %v362
          %v364 = vrot.slane %v363, 1
          %v365 = vadd.f32 %v363, %v364
          %s366 = vtos %v365
          %s367 = smul.f32 %s366, 9.536743e-07
          %v368 = vstv %s367
          %369 = vst [vmem:[%s225] sm:$0xff] %v368
        $region44: #{tpu_custom_call.1} parent=27 // pred_fallthru
          _
        %s370 = sand.u32 %s98, 1
        %s371 = scalar_lea.sflag [#allocation5], %s370
        %s372 = sand.u32 %s98, 1
        %s373 = smul.addr %s372, 8
        %s374 = scalar_lea.vmem [#allocation8], %s373
        // Predicated region
        $region45: #{tpu_custom_call.1} parent=27 // pred_check
          %p375 = pneg %p108
        $region46: #{tpu_custom_call.1} parent=27 // pred_check_branch
          %377 = sbr.rel (%p375) target = $region48
        $region47: #{tpu_custom_call.1} parent=27 // pred_region
          %379 = vsyncadd %s371, 0
          %s380 = smul.addr %s26, 8
          %s381 = scalar_lea.hbm %s2, %s380
          %s383 = sshll.u32 %s374, 4
          %s384 = int_to_ptr.vmem [resolvable:$true] %s383
          %s385 = sshll.u32 %s381, 4
          %s386 = int_to_ptr.hbm [resolvable:$true] %s385
          %388 = dma.vmem_to_hbm [thread:$0]  %s384, 128, %s386, %s371
        $region48: #{tpu_custom_call.1} parent=27 // pred_fallthru
          _
      $region28: #{tpu_custom_call.1} parent=5 // pred_fallthru
        _
      %p389 = scmp.le.s32.totalorder 2, %s17
      // Predicated region
      $region49: #{tpu_custom_call.1} parent=5 // pred_check
        %p390 = pneg %p389
      $region50: #{tpu_custom_call.1} parent=5 // pred_check_branch
        %392 = sbr.rel (%p390) target = $region52
      $region51: #{tpu_custom_call.1} parent=5 // pred_region
        %s393 = ssub.s32 %s17, 2
        // Predicated region
        $region53: #{tpu_custom_call.1} parent=51 // pred_check
          %p394 = pneg %p114
        $region54: #{tpu_custom_call.1} parent=51 // pred_check_branch
          %396 = sbr.rel (%p394) target = $region56
        $region55: #{tpu_custom_call.1} parent=51 // pred_region
          %s397 = sand.u32 %s99, 1
          %s398 = scalar_lea.sflag [#allocation5], %s397
          %s399 = sand.u32 %s99, 1
          %s400 = smul.addr %s399, 8
          %s401 = scalar_lea.vmem [#allocation8], %s400
          %403 = dma.done %s398, 128
        $region56: #{tpu_custom_call.1} parent=51 // pred_fallthru
          _
      $region52: #{tpu_custom_call.1} parent=5 // pred_fallthru
        _
    $region6: #{tpu_custom_call.1} parent=1 // loop_footer
      %s21 = sadd.s32 1, %s17
    $region7: #{tpu_custom_call.1} parent=1 // loop_footer_branch
      %16 = sbr.rel target = $region3
    $region8: #{tpu_custom_call.1} parent=1 // loop_exit
      _
    %404 = vsyncpa [#allocation4], 1
    %s405 = scalar_lea.sflag [#allocation4], 1
    %406 = vsyncpa %s405, 1
    %407 = vsyncpa [#allocation7], 1
    %s408 = scalar_lea.sflag [#allocation7], 1
    %409 = vsyncpa %s408, 1
    %410 = vsyncpa [#allocation5], 1
    %s411 = scalar_lea.sflag [#allocation5], 1
    %412 = vsyncpa %s411, 1

</llo_original>
